<compile_context>
chip_gen: v5e
topology: v5e:2x2
jax: 0.10.0
libtpu: 0.0.40
codegen_flags: <defaults>
</compile_context>

<pallas_src>
import functools

import jax
import jax.numpy as jnp
from jax.experimental import pallas as pl
from jax.experimental.pallas import tpu as pltpu


def _round_up(x, m):
    return (x + m - 1) // m * m


def _slab_layout(obs_dim, hidden, action_dim):
    """Row layout of the packed parameter slab [total_rows, hidden]."""
    obs_pad = _round_up(obs_dim, 8)        # rows 0:obs_pad   -> W1 (zero-padded rows)
    b1_row = obs_pad                       # row  b1_row      -> b1
    w23_row = _round_up(b1_row + 1, 8)     # rows w23_row:+H  -> [W2 | W3]
    b23_row = w23_row + hidden             # row  b23_row     -> [b2 | b3]
    total = _round_up(b23_row + 1, 8)
    return obs_pad, b1_row, w23_row, b23_row, total


def pack_params(params, obs_dim, hidden, action_dim):
    """One-time packing of all parameters into a single VMEM-friendly slab."""
    obs_pad, b1_row, w23_row, b23_row, total = _slab_layout(obs_dim, hidden, action_dim)
    a1 = action_dim + 1
    slab = jnp.zeros((total, hidden), jnp.float32)
    slab = slab.at[0:obs_dim, :].set(params["W1"])
    slab = slab.at[b1_row:b1_row + 1, :].set(params["b1"])
    w23 = jnp.concatenate([params["W2"], params["W3"]], axis=1)   # [H, A+1]
    b23 = jnp.concatenate([params["b2"], params["b3"]], axis=1)   # [1, A+1]
    slab = slab.at[w23_row:w23_row + hidden, 0:a1].set(w23)
    slab = slab.at[b23_row:b23_row + 1, 0:a1].set(b23)
    return slab


def _policy_kernel(x_ref, slab_ref, out_ref, *, obs_pad, hidden, action_dim,
                   b1_row, w23_row, b23_row):
    A = action_dim
    x = x_ref[...]                                            # [TB, obs_pad]

    # Static slices of the resident parameter slab (no extra DMAs).
    w1 = slab_ref[0:obs_pad, :]                               # [obs_pad, H]
    b1 = slab_ref[b1_row:b1_row + 1, :]                       # [1, H]
    w23 = slab_ref[w23_row:w23_row + hidden, 0:A + 1]         # [H, A+1]
    b23 = slab_ref[b23_row:b23_row + 1, 0:A + 1]              # [1, A+1]

    # affine1 + ReLU (K padded to 8; padded rows of W1 are zero).
    h = jnp.dot(x, w1, preferred_element_type=jnp.float32) + b1
    h = jnp.maximum(h, 0.0)                                   # [TB, H]

    # Fused action/value head: one MXU matmul, then static slices.
    z = jnp.dot(h, w23, preferred_element_type=jnp.float32) + b23   # [TB, A+1]
    logits = z[:, 0:A]
    value = z[:, A:A + 1]

    # softmax(dim=-1) over the A action logits (exact divide: approx
    # reciprocal would risk the 1e-5 check).
    m = jnp.max(logits, axis=-1, keepdims=True)
    e = jnp.exp(logits - m)
    probs = e / jnp.sum(e, axis=-1, keepdims=True)

    # Single lane-packed output [TB, A+1]: probs | value (one writeback DMA).
    out_ref[:, 0:A] = probs
    out_ref[:, A:A + 1] = value


def policy_forward(state, slab, obs_dim, hidden, action_dim, *, batch_tile=512):
    """state: [B, obs_dim] f32; slab: packed params. Returns (probs [B,A], value [B,1])."""
    B = state.shape[0]
    A = action_dim
    obs_pad, b1_row, w23_row, b23_row, total = _slab_layout(obs_dim, hidden, action_dim)

    tb = min(batch_tile, _round_up(B, 8))
    b_pad = _round_up(B, tb)
    x = state.astype(jnp.float32)
    if b_pad != B or obs_pad != obs_dim:
        x = jnp.pad(x, ((0, b_pad - B), (0, obs_pad - obs_dim)))

    kernel = functools.partial(
        _policy_kernel, obs_pad=obs_pad, hidden=hidden, action_dim=A,
        b1_row=b1_row, w23_row=w23_row, b23_row=b23_row)

    out = pl.pallas_call(
        kernel,
        out_shape=jax.ShapeDtypeStruct((b_pad, A + 1), jnp.float32),
        grid=(b_pad // tb,),
        in_specs=[
            pl.BlockSpec((tb, obs_pad), lambda i: (i, 0)),       # batch tile
            pl.BlockSpec((total, hidden), lambda i: (0, 0)),     # weights stay resident
        ],
        out_specs=pl.BlockSpec((tb, A + 1), lambda i: (i, 0)),
        compiler_params=pltpu.CompilerParams(
            dimension_semantics=("parallel",)),                  # 2-TC sharding on v7x
    )(x, slab)

    out = out[:B]
    return out[:, :A], out[:, A:A + 1]


def init_params(key, obs_dim, action_dim, hidden):
    """Deterministic init mimicking nn.Linear default U(-1/sqrt(fan_in), 1/sqrt(fan_in))."""
    ks = jax.random.split(key, 6)

    def uniform(k, shape, fan_in):
        bound = 1.0 / jnp.sqrt(jnp.float32(fan_in))
        return jax.random.uniform(k, shape, jnp.float32, -bound, bound)

    return {
        "W1": uniform(ks[0], (obs_dim, hidden), obs_dim),
        "b1": uniform(ks[1], (1, hidden), obs_dim),
        "W2": uniform(ks[2], (hidden, action_dim), hidden),
        "b2": uniform(ks[3], (1, action_dim), hidden),
        "W3": uniform(ks[4], (hidden, 1), hidden),
        "b3": uniform(ks[5], (1, 1), hidden),
    }


def policy_forward_ref(state, p):
    h = jnp.maximum(state @ p["W1"] + p["b1"], 0.0)
    logits = h @ p["W2"] + p["b2"]
    probs = jax.nn.softmax(logits, axis=-1)
    value = h @ p["W3"] + p["b3"]
    return probs, value


# TODO(synk): GAE returns/advantages, Categorical sampling and the training
# loss are host-side / sequential control flow in the original module and are
# not implemented as Pallas kernels here (only Policy.forward is).

if __name__ == "__main__":
    # CartPole-like dims: obs_dim=4, action_dim=2, hidden=128 (as in the module).
    B, OBS, ACT, HID = 8, 4, 2, 128

    key = jax.random.PRNGKey(0)
    k_state, k_params = jax.random.split(key)
    state = jax.random.normal(k_state, (B, OBS), jnp.float32)
    params = init_params(k_params, OBS, ACT, HID)
    slab = pack_params(params, OBS, HID, ACT)   # one-time parameter packing

    probs, value = jax.block_until_ready(policy_forward(state, slab, OBS, HID, ACT))

    # Cross-check against a pure-JAX reference of the same math.
    probs_ref, value_ref = policy_forward_ref(state, params)
    assert probs.shape == (B, ACT) and value.shape == (B, 1)
    assert jnp.allclose(probs, probs_ref, atol=1e-5, rtol=1e-5)
    assert jnp.allclose(value, value_ref, atol=1e-5, rtol=1e-5)
    assert jnp.allclose(jnp.sum(probs, axis=-1), 1.0, atol=1e-5)

    print("KERNEL_OK")
</pallas_src>

<mosaic_0001>
module attributes {stable_mosaic.version = 11 : i64} {
  func.func @_policy_kernel(%arg0: i32, %arg1: memref<8x8xf32, #tpu.memory_space<vmem>>, %arg2: memref<152x128xf32, #tpu.memory_space<vmem>>, %arg3: memref<8x3xf32, #tpu.memory_space<vmem>>) attributes {dimension_semantics = [#tpu.dimension_semantics<parallel>], iteration_bounds = array<i64: 1>, scalar_prefetch = 0 : i64, scratch_operands = 0 : i64, tpu.core_type = #tpu.core_type<tc>, window_params = [{transform_indices = @transform_0, window_bounds = array<i64: 8, 8>}, {pipeline_mode = #tpu.pipeline_mode<synchronous>, transform_indices = @transform_1, window_bounds = array<i64: 152, 128>}, {transform_indices = @transform_2, window_bounds = array<i64: 8, 3>}]} {
    %c0 = arith.constant 0 : index
    %c0_0 = arith.constant 0 : index
    %0 = vector.load %arg1[%c0, %c0_0] : memref<8x8xf32, #tpu.memory_space<vmem>>, vector<8x8xf32>
    %c0_1 = arith.constant 0 : index
    %c0_2 = arith.constant 0 : index
    %1 = vector.load %arg2[%c0_1, %c0_2] : memref<152x128xf32, #tpu.memory_space<vmem>>, vector<8x128xf32>
    %c8 = arith.constant 8 : index
    %c0_3 = arith.constant 0 : index
    %2 = vector.load %arg2[%c8, %c0_3] : memref<152x128xf32, #tpu.memory_space<vmem>>, vector<1x128xf32>
    %c16 = arith.constant 16 : index
    %c0_4 = arith.constant 0 : index
    %3 = vector.load %arg2[%c16, %c0_4] : memref<152x128xf32, #tpu.memory_space<vmem>>, vector<128x3xf32>
    %c144 = arith.constant 144 : index
    %c0_5 = arith.constant 0 : index
    %4 = vector.load %arg2[%c144, %c0_5] : memref<152x128xf32, #tpu.memory_space<vmem>>, vector<1x3xf32>
    %cst = arith.constant dense<0.000000e+00> : vector<8x128xf32>
    %5 = tpu.matmul %0, %1, %cst {dimension_numbers = #tpu.dot_dimension_numbers<[1], [0], [0], [1], [0, 0, 1, 1], [], []>} : vector<8x8xf32>, vector<8x128xf32>, vector<8x128xf32> -> vector<8x128xf32>
    %6 = vector.broadcast %2 : vector<1x128xf32> to vector<8x128xf32>
    %7 = arith.addf %5, %6 : vector<8x128xf32>
    %cst_6 = arith.constant 0.000000e+00 : f32
    %8 = vector.broadcast %cst_6 : f32 to vector<8x128xf32>
    %9 = arith.maximumf %7, %8 : vector<8x128xf32>
    %cst_7 = arith.constant dense<0.000000e+00> : vector<8x3xf32>
    %10 = tpu.matmul %9, %3, %cst_7 {dimension_numbers = #tpu.dot_dimension_numbers<[1], [0], [0], [1], [0, 0, 1, 1], [], []>} : vector<8x128xf32>, vector<128x3xf32>, vector<8x3xf32> -> vector<8x3xf32>
    %11 = vector.broadcast %4 : vector<1x3xf32> to vector<8x3xf32>
    %12 = arith.addf %10, %11 : vector<8x3xf32>
    %13 = vector.extract_strided_slice %12 {offsets = [0, 0], sizes = [8, 2], strides = [1, 1]} : vector<8x3xf32> to vector<8x2xf32>
    %14 = vector.extract_strided_slice %12 {offsets = [0, 2], sizes = [8, 1], strides = [1, 1]} : vector<8x3xf32> to vector<8x1xf32>
    %cst_8 = arith.constant dense<0xFF800000> : vector<8xf32>
    %15 = vector.multi_reduction <maximumf>, %13, %cst_8 [1] : vector<8x2xf32> to vector<8xf32>
    %16 = vector.shape_cast %15 : vector<8xf32> to vector<8x1xf32>
    %17 = vector.broadcast %16 : vector<8x1xf32> to vector<8x2xf32>
    %18 = arith.subf %13, %17 : vector<8x2xf32>
    %19 = math.exp %18 : vector<8x2xf32>
    %cst_9 = arith.constant dense<0.000000e+00> : vector<8xf32>
    %20 = vector.multi_reduction <add>, %19, %cst_9 [1] : vector<8x2xf32> to vector<8xf32>
    %21 = vector.shape_cast %20 : vector<8xf32> to vector<8x1xf32>
    %22 = vector.broadcast %21 : vector<8x1xf32> to vector<8x2xf32>
    %23 = arith.divf %19, %22 : vector<8x2xf32>
    %c0_10 = arith.constant 0 : index
    %c0_11 = arith.constant 0 : index
    %24 = vector.load %arg3[%c0_10, %c0_11] : memref<8x3xf32, #tpu.memory_space<vmem>>, vector<8x2xf32>
    tpu.vector_store %arg3[%c0_10, %c0_11], %23 {strides = array<i32>} : memref<8x3xf32, #tpu.memory_space<vmem>>, vector<8x2xf32>,
    %c0_12 = arith.constant 0 : index
    %c2 = arith.constant 2 : index
    %25 = vector.load %arg3[%c0_12, %c2] : memref<8x3xf32, #tpu.memory_space<vmem>>, vector<8x1xf32>
    tpu.vector_store %arg3[%c0_12, %c2], %14 {strides = array<i32>} : memref<8x3xf32, #tpu.memory_space<vmem>>, vector<8x1xf32>,
    return
  }
  func.func @transform_0(%arg0: i32) -> (i32, i32) {
    %c0_i32 = arith.constant 0 : i32
    %c0_i32_0 = arith.constant 0 : i32
    return %arg0, %c0_i32 : i32, i32
  }
  func.func @transform_1(%arg0: i32) -> (i32, i32) {
    %c0_i32 = arith.constant 0 : i32
    %c0_i32_0 = arith.constant 0 : i32
    %c0_i32_1 = arith.constant 0 : i32
    return %c0_i32, %c0_i32_0 : i32, i32
  }
  func.func @transform_2(%arg0: i32) -> (i32, i32) {
    %c0_i32 = arith.constant 0 : i32
    %c0_i32_0 = arith.constant 0 : i32
    return %arg0, %c0_i32 : i32, i32
  }
}

</mosaic_0001>

<llo_original>
// kernel: tpu_custom_call.1
$region0: #{tpu_custom_call.1}
  #allocation0 [shape = 'u32[]', space=smem, size = 0x4, offset = 0x4, fixed_abs, tag = 'smem constant byte address 0x4 - core index']
  #allocation1 [shape = 'u32[72,128]{1,0:T(1,128)}', space=vmem, size = 0x9000, scoped, tag = 'internal scratch']
  %s0 = inlined_call_operand.hbm [shape: f32[8,8], index: 0, kind: input, shape index: {}]
  %s1 = inlined_call_operand.hbm [shape: f32[152,128], index: 1, kind: input, shape index: {}]
  %s2 = inlined_call_operand.vmem [shape: f32[8,3], index: 2, kind: output, shape index: {}]
  %s3 = sld [smem:[#allocation0]]
  $region26: #{tpu_custom_call.1} parent=0
    _
  %s5 = ssub.s32 1, %s3
  %s6 = scalar_select 0, %s5, %s3
  $region1: #{tpu_custom_call.1} parent=0
    #allocation2 [shape = 'u8[4096]{0}', space=vmem, size = 0x1000, scoped, tag = 'input window, operand 0, single buffered']
    #allocation3 [shape = 's32[1]{0}', space=sflag, size = 0x4, scoped, tag = 'scoped memory for tpu_custom_call.1']
    #allocation4 [shape = 'u8[77824]{0}', space=vmem, size = 0x13000, scoped, tag = 'input window, operand 1, single buffered']
    #allocation5 [shape = 's32[1]{0}', space=sflag, size = 0x4, scoped, tag = 'scoped memory for tpu_custom_call.1']
    %7 = vsyncpa [#allocation3], 0
    %8 = vsyncpa [#allocation5], 0
    // Predicated region
    $region2: #{tpu_custom_call.1} parent=1 // pred_check
      _
    $region3: #{tpu_custom_call.1} parent=1 // pred_check_branch
      %10 = sbr.rel (0) target = $region5
    $region4: #{tpu_custom_call.1} parent=1 // pred_region
      %12 = vsyncadd [#allocation3], 0
      %s14 = sshll.u32 %s0, 4
      %s15 = int_to_ptr.hbm [resolvable:$true] %s14
      %s16 = sshll.u32 [#allocation2], 4
      %s17 = int_to_ptr.vmem [resolvable:$true] %s16
      %19 = dma.hbm_to_vmem [thread:$0]  %s15, 128, %s17, [#allocation3]
    $region5: #{tpu_custom_call.1} parent=1 // pred_fallthru
      _
    // Predicated region
    $region6: #{tpu_custom_call.1} parent=1 // pred_check
      _
    $region7: #{tpu_custom_call.1} parent=1 // pred_check_branch
      %21 = sbr.rel (0) target = $region9
    $region8: #{tpu_custom_call.1} parent=1 // pred_region
      %23 = vsyncadd [#allocation5], 0
      %s24 = sshll.u32 %s1, 4
      %s25 = int_to_ptr.hbm [resolvable:$true] %s24
      %s26 = sshll.u32 [#allocation4], 4
      %s27 = int_to_ptr.vmem [resolvable:$true] %s26
      %32 = dma.hbm_to_vmem [thread:$0]  %s25, 2432, %s27, [#allocation5], 128, 128, 8
    $region9: #{tpu_custom_call.1} parent=1 // pred_fallthru
      _
    // Predicated region
    $region10: #{tpu_custom_call.1} parent=1 // pred_check
      _
    $region11: #{tpu_custom_call.1} parent=1 // pred_check_branch
      %34 = sbr.rel (0) target = $region13
    $region12: #{tpu_custom_call.1} parent=1 // pred_region
      %36 = dma.done [#allocation3], 128
    $region13: #{tpu_custom_call.1} parent=1 // pred_fallthru
      _
    // Predicated region
    $region14: #{tpu_custom_call.1} parent=1 // pred_check
      _
    $region15: #{tpu_custom_call.1} parent=1 // pred_check_branch
      %38 = sbr.rel (0) target = $region17
    $region16: #{tpu_custom_call.1} parent=1 // pred_region
      %40 = dma.done [#allocation5], 2432
    $region17: #{tpu_custom_call.1} parent=1 // pred_fallthru
      _
    %v41 = vld [vmem:[#allocation2] sm:$0xff]
    %v42 = vld [vmem:[#allocation4] sm:$0xff]
    %v43 = vld [vmem:[#allocation4 + $0x8] sm:$0x1]
    %v44 = vld [vmem:[#allocation4 + $0x10] sm:$0xff]
    %v45 = vld [vmem:[#allocation4 + $0x18] sm:$0xff]
    %v46 = vld [vmem:[#allocation4 + $0x20] sm:$0xff]
    %v47 = vld [vmem:[#allocation4 + $0x28] sm:$0xff]
    %v48 = vld [vmem:[#allocation4 + $0x30] sm:$0xff]
    %v49 = vld [vmem:[#allocation4 + $0x38] sm:$0xff]
    %v50 = vld [vmem:[#allocation4 + $0x40] sm:$0xff]
    %v51 = vld [vmem:[#allocation4 + $0x48] sm:$0xff]
    %v52 = vld [vmem:[#allocation4 + $0x50] sm:$0xff]
    %v53 = vld [vmem:[#allocation4 + $0x58] sm:$0xff]
    %v54 = vld [vmem:[#allocation4 + $0x60] sm:$0xff]
    %v55 = vld [vmem:[#allocation4 + $0x68] sm:$0xff]
    %v56 = vld [vmem:[#allocation4 + $0x70] sm:$0xff]
    %v57 = vld [vmem:[#allocation4 + $0x78] sm:$0xff]
    %v58 = vld [vmem:[#allocation4 + $0x80] sm:$0xff]
    %v59 = vld [vmem:[#allocation4 + $0x88] sm:$0xff]
    %v60 = vld [vmem:[#allocation4 + $0x90] sm:$0x1]
    %v61 = vperm.slane %v43, 0
    %vm62 = vcmask 64512
    %v64 = vsel %vm62, %v41, 0
    %66 = vmatpush.msra.mxu0 0.0
    %67 = vmatpush.msra.mxu0 0.0
    %68 = vmatpush.msra.mxu0 0.0
    %69 = vmatpush.msra.mxu0 0.0
    %70 = vmatpush.msra.mxu0 0.0
    %71 = vmatpush.msra.mxu0 0.0
    %72 = vmatpush.msra.mxu0 0.0
    %73 = vmatpush.msra.mxu0 0.0
    %74 = vmatpush.msra.mxu0 0.0
    %75 = vmatpush.msra.mxu0 0.0
    %76 = vmatpush.msra.mxu0 0.0
    %77 = vmatpush.msra.mxu0 0.0
    %78 = vmatpush.msra.mxu0 0.0
    %79 = vmatpush.msra.mxu0 0.0
    %80 = vmatpush.msra.mxu0 0.0
    %81 = vmatpush.msra.mxu0 %v42
    %82 = vmatmul.f32.gmra.mxu0 %v64
    %v83 = vpop.f32.mrf.mxu0
    %v84 = vadd.f32 %v61, %v83
    %85 = vdwg.mxu0
    %v86 = vmax.f32 %v84, 0.0
    %v87 = vperm.slane %v60, 0
    %88 = vmatpush.msra.mxu0 %v59
    %89 = vmatpush.msra.mxu0 %v58
    %90 = vmatpush.msra.mxu0 %v57
    %91 = vmatpush.msra.mxu0 %v56
    %92 = vmatpush.msra.mxu0 %v55
    %93 = vmatpush.msra.mxu0 %v54
    %94 = vmatpush.msra.mxu0 %v53
    %95 = vmatpush.msra.mxu0 %v52
    %96 = vmatpush.msra.mxu0 %v51
    %97 = vmatpush.msra.mxu0 %v50
    %98 = vmatpush.msra.mxu0 %v49
    %99 = vmatpush.msra.mxu0 %v48
    %100 = vmatpush.msra.mxu0 %v47
    %101 = vmatpush.msra.mxu0 %v46
    %102 = vmatpush.msra.mxu0 %v45
    %103 = vmatpush.msra.mxu0 %v44
    %104 = vmatmul.f32.gmra.mxu0 %v86
    %v105 = vpop.f32.mrf.mxu0
    %v106 = vadd.f32 %v87, %v105
    %107 = vdwg.mxu0
    %vm108 = vcmask 15360
    %v109 = vsel %vm108, %v106, -inf
    %110 = vmax.xlane.f32.xlu0 %v109
    %v111 = vpop.xlane.xlu0 %110
    %v112 = vsub.f32 %v106, %v111
    %v113 = vmul.f32 %v112, 1.442695
    %v114 = vpow.pop %v113
    %v115 = vsel %vm108, %v114, 0.0
    %116 = vadd.xlane.f32.xlu0 %v115
    %v117 = vpop.xlane.xlu0 %116
    %v118 = vrcp.pop %v117
    %v119 = vmul.f32 %v117, %v118
    %v120 = vsub.f32 1.0, %v119
    %v121 = vmul.f32 %v118, %v120
    %v122 = vadd.f32 %v118, %v121
    %vm123 = vweird.f32 %v117
    %vm124 = vweird.f32 %v118
    %vm125 = vmor %vm123, %vm124
    %v126 = vsel %vm125, %v118, %v122
    %v127 = vand.u32 2147483647, %v117
    %vm128 = vcmp.eq.f32.partialorder %v127, 8.507059e+37
    %v129 = vand.u32 %v117, 2147483648
    %v130 = vor.u32 1.1754944e-38, %v129
    %v131 = vsel %vm128, %v130, %v126
    %v132 = vmul.f32 %v114, %v131
    %133 = vst.msk [vmem:[%s2] sm:$0xff] %vm108, %v132
    %vm134 = vcmask 23568
    %135 = vst.msk [vmem:[%s2] sm:$0xff] %vm134, %v106
    // Predicated region
    $region18: #{tpu_custom_call.1} parent=1 // pred_check
      _
    $region19: #{tpu_custom_call.1} parent=1 // pred_check_branch
      %137 = sbr.rel (0) target = $region21
    $region20: #{tpu_custom_call.1} parent=1 // pred_region
      _
    $region21: #{tpu_custom_call.1} parent=1 // pred_fallthru
      _
    // Predicated region
    $region22: #{tpu_custom_call.1} parent=1 // pred_check
      _
    $region23: #{tpu_custom_call.1} parent=1 // pred_check_branch
      %139 = sbr.rel (0) target = $region25
    $region24: #{tpu_custom_call.1} parent=1 // pred_region
      _
    $region25: #{tpu_custom_call.1} parent=1 // pred_fallthru
      _
    %140 = vsyncpa [#allocation3], 1
    %141 = vsyncpa [#allocation5], 1

</llo_original>
